<compile_context>
chip_gen: v7x
topology: tpu7x:2x2x1
jax: 0.10.0
libtpu: 0.0.40
codegen_flags: <defaults>
</compile_context>

<pallas_src>
import jax
import jax.numpy as jnp
from jax import lax
from jax.experimental import pallas as pl
from jax.experimental.pallas import tpu as pltpu

LANES = 128
MAX_TILE_ROWS = 1024      # (1024, 128) f32 tile = 512 KiB; fits v5e/v6e/v7x easily
NUM_PARTIALS = 2          # split the reduction across (up to) 2 TensorCores (v7x)


# ---------------------------------------------------------------------------
# Kernels
# ---------------------------------------------------------------------------

def _make_sqdiff_kernel(rows, tile_rows, steps, needs_mask):
    """sum((pred - gt)^2) over the tiles handled by one partial."""

    def kernel(pred_ref, gt_ref, out_ref, acc_ref):
        j = pl.program_id(1)

        @pl.when(j == 0)
        def _():
            acc_ref[...] = jnp.zeros_like(acc_ref)

        d = pred_ref[...].astype(jnp.float32) - gt_ref[...].astype(jnp.float32)
        sq = d * d
        if needs_mask:
            # Intended (unclamped) global tile index; rows past `rows` (boundary
            # padding garbage or duplicated clamped tiles) contribute zero.
            t = pl.program_id(0) * steps + j
            rem = rows - t * tile_rows
            row_ids = lax.broadcasted_iota(jnp.int32, (tile_rows, LANES), 0)
            sq = jnp.where(row_ids < rem, sq, 0.0)
        acc_ref[...] += sq

        @pl.when(j == steps - 1)
        def _():
            out_ref[0, 0] = jnp.sum(acc_ref[...])

    return kernel


def _make_masked_sqdiff_kernel(rows, tile_rows, steps, needs_mask):
    """sum((pred - gt)^2 * valid) and sum(valid) over one partial's tiles."""

    def kernel(pred_ref, gt_ref, valid_ref, num_ref, den_ref, nacc_ref, dacc_ref):
        j = pl.program_id(1)

        @pl.when(j == 0)
        def _():
            nacc_ref[...] = jnp.zeros_like(nacc_ref)
            dacc_ref[...] = jnp.zeros_like(dacc_ref)

        d = pred_ref[...].astype(jnp.float32) - gt_ref[...].astype(jnp.float32)
        v = valid_ref[...].astype(jnp.float32)
        sqv = d * d * v
        if needs_mask:
            t = pl.program_id(0) * steps + j
            rem = rows - t * tile_rows
            row_ids = lax.broadcasted_iota(jnp.int32, (tile_rows, LANES), 0)
            keep = row_ids < rem
            sqv = jnp.where(keep, sqv, 0.0)
            v = jnp.where(keep, v, 0.0)
        nacc_ref[...] += sqv
        dacc_ref[...] += v

        @pl.when(j == steps - 1)
        def _():
            num_ref[0, 0] = jnp.sum(nacc_ref[...])
            den_ref[0, 0] = jnp.sum(dacc_ref[...])

    return kernel


# ---------------------------------------------------------------------------
# Tiling / wrapper helpers
# ---------------------------------------------------------------------------

def _tiling(rows):
    tile_rows = min(MAX_TILE_ROWS, rows)          # full-dim block when small
    num_tiles = pl.cdiv(rows, tile_rows)
    num_partials = min(NUM_PARTIALS, num_tiles)
    steps = pl.cdiv(num_tiles, num_partials)
    needs_mask = (rows % tile_rows != 0) or (num_partials * steps != num_tiles)
    return tile_rows, num_tiles, num_partials, steps, needs_mask


def _make_index_map(steps, num_tiles, num_partials):
    if num_partials * steps == num_tiles:
        return lambda p, j: (p * steps + j, 0)
    # Clamp so the DMA stays in-bounds; duplicated tiles are fully masked in-kernel.
    return lambda p, j: (jnp.minimum(p * steps + j, num_tiles - 1), 0)


def _split_bulk(flat):
    """Split a 1-D array into a lane-dense (rows,128) bulk (no copy when n%128==0)
    and a tiny (<128 elem) tail."""
    n = flat.shape[0]
    n_bulk = (n // LANES) * LANES
    if n_bulk == n:
        return flat.reshape(n // LANES, LANES), None
    if n_bulk == 0:
        return None, flat
    # TODO(synk): the prefix slice below materializes a copy when n % 128 != 0;
    # a 1-D blocked kernel with an in-kernel lane mask would avoid that traffic.
    return flat[:n_bulk].reshape(n_bulk // LANES, LANES), flat[n_bulk:]


def _sqdiff_sum_pallas(p2d, g2d):
    rows = p2d.shape[0]
    tile_rows, num_tiles, num_partials, steps, needs_mask = _tiling(rows)
    idx = _make_index_map(steps, num_tiles, num_partials)
    tile_spec = pl.BlockSpec((tile_rows, LANES), idx)
    partials = pl.pallas_call(
        _make_sqdiff_kernel(rows, tile_rows, steps, needs_mask),
        out_shape=jax.ShapeDtypeStruct((num_partials, 1), jnp.float32),
        grid=(num_partials, steps),
        in_specs=[tile_spec, tile_spec],
        out_specs=pl.BlockSpec((1, 1), lambda p, j: (p, 0), memory_space=pltpu.SMEM),
        scratch_shapes=[pltpu.VMEM((tile_rows, LANES), jnp.float32)],
        compiler_params=pltpu.CompilerParams(
            dimension_semantics=("parallel", "arbitrary")),
    )(p2d, g2d)
    return jnp.sum(partials)


def _masked_sums_pallas(p2d, g2d, v2d):
    rows = p2d.shape[0]
    tile_rows, num_tiles, num_partials, steps, needs_mask = _tiling(rows)
    idx = _make_index_map(steps, num_tiles, num_partials)
    tile_spec = pl.BlockSpec((tile_rows, LANES), idx)
    scalar_out = pl.BlockSpec((1, 1), lambda p, j: (p, 0), memory_space=pltpu.SMEM)
    num_p, den_p = pl.pallas_call(
        _make_masked_sqdiff_kernel(rows, tile_rows, steps, needs_mask),
        out_shape=(jax.ShapeDtypeStruct((num_partials, 1), jnp.float32),
                   jax.ShapeDtypeStruct((num_partials, 1), jnp.float32)),
        grid=(num_partials, steps),
        in_specs=[tile_spec, tile_spec, tile_spec],
        out_specs=(scalar_out, scalar_out),
        scratch_shapes=[pltpu.VMEM((tile_rows, LANES), jnp.float32),
                        pltpu.VMEM((tile_rows, LANES), jnp.float32)],
        compiler_params=pltpu.CompilerParams(
            dimension_semantics=("parallel", "arbitrary")),
    )(p2d, g2d, v2d)
    return jnp.sum(num_p), jnp.sum(den_p)


def _sum_sqdiff_flat(p_f, g_f):
    p2d, p_tail = _split_bulk(p_f)
    g2d, g_tail = _split_bulk(g_f)
    total = jnp.float32(0.0)
    if p2d is not None:
        total = total + _sqdiff_sum_pallas(p2d, g2d)
    if p_tail is not None:
        d = p_tail.astype(jnp.float32) - g_tail.astype(jnp.float32)
        total = total + jnp.sum(d * d)
    return total


def _masked_sums_flat(p_f, g_f, v_f):
    p2d, p_tail = _split_bulk(p_f)
    g2d, g_tail = _split_bulk(g_f)
    v2d, v_tail = _split_bulk(v_f)
    num = jnp.float32(0.0)
    den = jnp.float32(0.0)
    if p2d is not None:
        kn, kd = _masked_sums_pallas(p2d, g2d, v2d)
        num = num + kn
        den = den + kd
    if p_tail is not None:
        d = p_tail.astype(jnp.float32) - g_tail.astype(jnp.float32)
        vt = v_tail.astype(jnp.float32)
        num = num + jnp.sum(d * d * vt)
        den = den + jnp.sum(vt)
    return num, den


# ---------------------------------------------------------------------------
# Public entry point (matches L2.forward semantics)
# ---------------------------------------------------------------------------

def l2_metric(pred, gt, valid=None, boundary_ignore=None):
    if boundary_ignore is not None:
        bi = boundary_ignore
        pred = pred[..., bi:-bi, bi:-bi]
        gt = gt[..., bi:-bi, bi:-bi]
        if valid is not None:
            valid = valid[..., bi:-bi, bi:-bi]

    n = pred.size  # static Python int
    pred_f = pred.reshape(-1)
    gt_f = gt.reshape(-1)

    if valid is None:
        total = _sum_sqdiff_flat(pred_f, gt_f)
        return total / jnp.float32(n)

    # masked path: mse = sum(sq * valid) / (sum(valid) * elem_ratio + eps)
    elem_ratio = float(pred.size) / float(valid.size)
    eps = jnp.float32(1e-12)

    # Keep the mask narrow in HBM; cast to f32 inside the kernel.
    if valid.dtype == jnp.bool_:
        valid_arr = valid.astype(jnp.int8)
    elif jnp.issubdtype(valid.dtype, jnp.floating):
        valid_arr = valid
    else:
        valid_arr = valid.astype(jnp.float32)

    same_shape = (valid_arr.shape == pred.shape)
    if not same_shape:
        # Spec-exact denominator: sum over the ORIGINAL (un-broadcast) mask.
        den_orig = jnp.sum(valid.astype(jnp.float32))
        # TODO(synk): for channel-broadcast masks (e.g. (B,1,H,W)), reuse the same
        # mask tile across channels via the index_map instead of materializing.
        valid_arr = jnp.broadcast_to(valid_arr, pred.shape)

    valid_f = valid_arr.reshape(-1)
    num, den = _masked_sums_flat(pred_f, gt_f, valid_f)

    if same_shape:
        # elem_ratio == 1 here, so den == sum(valid) * elem_ratio.
        return num / (den + eps)
    return num / (den_orig * jnp.float32(elem_ratio) + eps)


# ---------------------------------------------------------------------------
# Demo / self-test
# ---------------------------------------------------------------------------

if __name__ == "__main__":
    key = jax.random.PRNGKey(0)
    k1, k2, k3 = jax.random.split(key, 3)

    B, C, H, W = 2, 4, 16, 16   # NCHW, like the PyTorch module
    pred = jax.random.normal(k1, (B, C, H, W), dtype=jnp.float32)
    gt = jax.random.normal(k2, (B, C, H, W), dtype=jnp.float32)
    valid = (jax.random.uniform(k3, (B, C, H, W)) > 0.3)

    # Unmasked MSE
    out = l2_metric(pred, gt)
    out = jax.block_until_ready(out)
    ref = jnp.mean((pred - gt) ** 2)
    assert jnp.allclose(out, ref, rtol=1e-5, atol=1e-6)

    # Masked MSE (reduction='none' path), same-shape mask
    out_m = l2_metric(pred, gt, valid=valid)
    out_m = jax.block_until_ready(out_m)
    sq = (pred - gt) ** 2
    elem_ratio = sq.size / valid.size
    ref_m = (sq * valid.astype(jnp.float32)).sum() / (
        valid.astype(jnp.float32).sum() * elem_ratio + 1e-12)
    assert jnp.allclose(out_m, ref_m, rtol=1e-5, atol=1e-6)

    # Masked MSE with a channel-broadcast mask (B,1,H,W): exercises elem_ratio != 1.
    valid_c = (jax.random.uniform(k3, (B, 1, H, W)) > 0.4)
    out_c = jax.block_until_ready(l2_metric(pred, gt, valid=valid_c))
    er_c = sq.size / valid_c.size
    ref_c = (sq * valid_c.astype(jnp.float32)).sum() / (
        valid_c.astype(jnp.float32).sum() * er_c + 1e-12)
    assert jnp.allclose(out_c, ref_c, rtol=1e-5, atol=1e-6)

    # Boundary-ignore path (smaller spatial crop -> full-dim tile path)
    out_b = l2_metric(pred, gt, boundary_ignore=2)
    out_b = jax.block_until_ready(out_b)
    ref_b = jnp.mean((pred[..., 2:-2, 2:-2] - gt[..., 2:-2, 2:-2]) ** 2)
    assert jnp.allclose(out_b, ref_b, rtol=1e-5, atol=1e-6)

    # Larger case exercising big tiles, multi-step grid, 2-partial split and
    # a ragged row-tile boundary (rows = 2304, not a multiple of 1024).
    big = (2, 3, 384, 128)
    bp = jax.random.normal(k1, big, dtype=jnp.float32)
    bg = jax.random.normal(k2, big, dtype=jnp.float32)
    bv = (jax.random.uniform(k3, big) > 0.5)
    out_big = jax.block_until_ready(l2_metric(bp, bg))
    ref_big = jnp.mean((bp - bg) ** 2)
    assert jnp.allclose(out_big, ref_big, rtol=1e-5, atol=1e-6)
    out_bigm = jax.block_until_ready(l2_metric(bp, bg, valid=bv))
    sqb = (bp - bg) ** 2
    ref_bigm = (sqb * bv.astype(jnp.float32)).sum() / (
        bv.astype(jnp.float32).sum() * (sqb.size / bv.size) + 1e-12)
    assert jnp.allclose(out_bigm, ref_bigm, rtol=1e-5, atol=1e-6)

    print("KERNEL_OK")
</pallas_src>

<mosaic_0001>
module attributes {stable_mosaic.version = 11 : i64} {
  func.func @kernel(%arg0: i32, %arg1: i32, %arg2: memref<16x128xf32, #tpu.memory_space<vmem>>, %arg3: memref<16x128xf32, #tpu.memory_space<vmem>>, %arg4: memref<1x1xf32, #tpu.memory_space<smem>>, %arg5: memref<16x128xf32, #tpu.memory_space<vmem>>) attributes {dimension_semantics = [#tpu.dimension_semantics<parallel>, #tpu.dimension_semantics<arbitrary>], iteration_bounds = array<i64: 1, 1>, scalar_prefetch = 0 : i64, scratch_operands = 1 : i64, tpu.core_type = #tpu.core_type<tc>, window_params = [{transform_indices = @transform_0, window_bounds = array<i64: 16, 128>}, {transform_indices = @transform_1, window_bounds = array<i64: 16, 128>}, {transform_indices = @transform_2, window_bounds = array<i64: 1, 1>}]} {
    %c0_i32 = arith.constant 0 : i32
    %0 = arith.cmpi eq, %arg1, %c0_i32 : i32
    %1 = arith.extui %0 : i1 to i32
    %c0_i32_0 = arith.constant 0 : i32
    %2 = arith.cmpi ne, %1, %c0_i32_0 : i32
    scf.if %2 {
      %cst = arith.constant 0.000000e+00 : f32
      %13 = vector.broadcast %cst : f32 to vector<16x128xf32>
      %c0_10 = arith.constant 0 : index
      %c0_11 = arith.constant 0 : index
      %14 = vector.load %arg5[%c0_10, %c0_11] : memref<16x128xf32, #tpu.memory_space<vmem>>, vector<16x128xf32>
      tpu.vector_store %arg5[%c0_10, %c0_11], %13 {strides = array<i32>} : memref<16x128xf32, #tpu.memory_space<vmem>>, vector<16x128xf32>,
    } else {
    }
    %c0 = arith.constant 0 : index
    %c0_1 = arith.constant 0 : index
    %3 = vector.load %arg2[%c0, %c0_1] : memref<16x128xf32, #tpu.memory_space<vmem>>, vector<16x128xf32>
    %c0_2 = arith.constant 0 : index
    %c0_3 = arith.constant 0 : index
    %4 = vector.load %arg3[%c0_2, %c0_3] : memref<16x128xf32, #tpu.memory_space<vmem>>, vector<16x128xf32>
    %5 = arith.subf %3, %4 : vector<16x128xf32>
    %6 = arith.mulf %5, %5 : vector<16x128xf32>
    %c0_4 = arith.constant 0 : index
    %c0_5 = arith.constant 0 : index
    %7 = vector.load %arg5[%c0_4, %c0_5] : memref<16x128xf32, #tpu.memory_space<vmem>>, vector<16x128xf32>
    %8 = arith.addf %7, %6 : vector<16x128xf32>
    %c0_6 = arith.constant 0 : index
    %c0_7 = arith.constant 0 : index
    %9 = vector.load %arg5[%c0_6, %c0_7] : memref<16x128xf32, #tpu.memory_space<vmem>>, vector<16x128xf32>
    tpu.vector_store %arg5[%c0_6, %c0_7], %8 {strides = array<i32>} : memref<16x128xf32, #tpu.memory_space<vmem>>, vector<16x128xf32>,
    %c0_i32_8 = arith.constant 0 : i32
    %10 = arith.cmpi eq, %arg1, %c0_i32_8 : i32
    %11 = arith.extui %10 : i1 to i32
    %c0_i32_9 = arith.constant 0 : i32
    %12 = arith.cmpi ne, %11, %c0_i32_9 : i32
    scf.if %12 {
      %c0_10 = arith.constant 0 : index
      %c0_11 = arith.constant 0 : index
      %13 = vector.load %arg5[%c0_10, %c0_11] : memref<16x128xf32, #tpu.memory_space<vmem>>, vector<16x128xf32>
      %14 = vector.shape_cast %13 : vector<16x128xf32> to vector<1x16x128xf32>
      %cst = arith.constant dense<0.000000e+00> : vector<1xf32>
      %15 = vector.multi_reduction <add>, %14, %cst [1, 2] : vector<1x16x128xf32> to vector<1xf32>
      %16 = vector.shape_cast %15 : vector<1xf32> to vector<1x1x1xf32>
      %17 = vector.extract %16[0, 0, 0] : f32 from vector<1x1x1xf32>
      %c0_12 = arith.constant 0 : index
      %c0_13 = arith.constant 0 : index
      %18 = memref.load %arg4[%c0_12, %c0_13] : memref<1x1xf32, #tpu.memory_space<smem>>
      memref.store %17, %arg4[%c0_12, %c0_13] : memref<1x1xf32, #tpu.memory_space<smem>>
    } else {
    }
    return
  }
  func.func @transform_0(%arg0: i32, %arg1: i32) -> (i32, i32) {
    %c1_i32 = arith.constant 1 : i32
    %0 = arith.muli %arg0, %c1_i32 : i32
    %1 = arith.addi %0, %arg1 : i32
    %c0_i32 = arith.constant 0 : i32
    %c0_i32_0 = arith.constant 0 : i32
    return %1, %c0_i32 : i32, i32
  }
  func.func @transform_1(%arg0: i32, %arg1: i32) -> (i32, i32) {
    %c1_i32 = arith.constant 1 : i32
    %0 = arith.muli %arg0, %c1_i32 : i32
    %1 = arith.addi %0, %arg1 : i32
    %c0_i32 = arith.constant 0 : i32
    %c0_i32_0 = arith.constant 0 : i32
    return %1, %c0_i32 : i32, i32
  }
  func.func @transform_2(%arg0: i32, %arg1: i32) -> (i32, i32) {
    %c0_i32 = arith.constant 0 : i32
    %c0_i32_0 = arith.constant 0 : i32
    return %arg0, %c0_i32 : i32, i32
  }
}

</mosaic_0001>

<llo_original>
// kernel: tpu_custom_call.1
$region0: #{tpu_custom_call.1}
  #allocation0 [shape = 'u32[]', space=smem, size = 0x4, offset = 0x4, fixed_abs, tag = 'smem constant byte address 0x4 - core index']
  #allocation1 [shape = 'u32[144,128]{1,0:T(1,128)}', space=vmem, size = 0x12000, scoped, tag = 'internal scratch']
  #allocation2 [shape = 'f32[16,128]{1,0:T(8,128)}', space=vmem, size = 0x2000, scoped, tag = 'scratch operand']
  %s0 = inlined_call_operand.hbm [shape: f32[16,128], index: 0, kind: input, shape index: {}]
  %s1 = inlined_call_operand.hbm [shape: f32[16,128], index: 1, kind: input, shape index: {}]
  %s2 = inlined_call_operand.hbm [shape: f32[1,1], index: 2, kind: output, shape index: {}]
  %s3 = sld [smem:[#allocation0]]
  $region34: #{tpu_custom_call.1} parent=0
    _
  %s5 = ssub.s32 1, %s3
  %s6 = scalar_select 0, %s5, %s3
  $region1: #{tpu_custom_call.1} parent=0
    #allocation3 [shape = 'u8[8192]{0}', space=vmem, size = 0x2000, scoped, tag = 'input window, operand 0, single buffered']
    #allocation4 [shape = 's32[1]{0}', space=sflag, size = 0x4, scoped, tag = 'scoped memory for tpu_custom_call.1']
    #allocation5 [shape = 's32[1]{0}', space=sflag, size = 0x4, scoped, tag = 'scoped memory for tpu_custom_call.1']
    #allocation6 [shape = 'u8[8192]{0}', space=vmem, size = 0x2000, scoped, tag = 'input window, operand 1, single buffered']
    #allocation7 [shape = 's32[1]{0}', space=sflag, size = 0x4, scoped, tag = 'scoped memory for tpu_custom_call.1']
    #allocation8 [shape = 'u8[512]{0}', space=smem, size = 0x200, scoped, tag = 'output window, operand 0, single buffered']
    %7 = vsyncpa [#allocation4], 0
    %8 = vsyncpa [#allocation7], 0
    %9 = vsyncpa [#allocation5], 0
    // Predicated region
    $region2: #{tpu_custom_call.1} parent=1 // pred_check
      _
    $region3: #{tpu_custom_call.1} parent=1 // pred_check_branch
      %11 = sbr.rel (0) target = $region5
    $region4: #{tpu_custom_call.1} parent=1 // pred_region
      %s12 = sadd.s32 0, 0
      %s13 = smul.u32 2, %s12
      %s15 = ssub.s32 256, 256
      %16 = vsyncadd [#allocation4], %s15
      %s17 = smul.addr %s13, 128
      %s18 = scalar_lea.hbm %s0, %s17
      %s19 = sshll.u32 [#allocation3], 4
      %s20 = int_to_ptr.vmem [resolvable:$true] %s19
      %25 = dma.hbm_to_vmem [thread:$0]  %s18, 256, %s20, [#allocation4], 128, 128, 8
    $region5: #{tpu_custom_call.1} parent=1 // pred_fallthru
      _
    // Predicated region
    $region6: #{tpu_custom_call.1} parent=1 // pred_check
      _
    $region7: #{tpu_custom_call.1} parent=1 // pred_check_branch
      %27 = sbr.rel (0) target = $region9
    $region8: #{tpu_custom_call.1} parent=1 // pred_region
      %s28 = sadd.s32 0, 0
      %s29 = smul.u32 2, %s28
      %s31 = ssub.s32 256, 256
      %32 = vsyncadd [#allocation7], %s31
      %s33 = smul.addr %s29, 128
      %s34 = scalar_lea.hbm %s1, %s33
      %s35 = sshll.u32 [#allocation6], 4
      %s36 = int_to_ptr.vmem [resolvable:$true] %s35
      %41 = dma.hbm_to_vmem [thread:$0]  %s34, 256, %s36, [#allocation7], 128, 128, 8
    $region9: #{tpu_custom_call.1} parent=1 // pred_fallthru
      _
    // Predicated region
    $region10: #{tpu_custom_call.1} parent=1 // pred_check
      _
    $region11: #{tpu_custom_call.1} parent=1 // pred_check_branch
      %43 = sbr.rel (0) target = $region13
    $region12: #{tpu_custom_call.1} parent=1 // pred_region
      %44 = dma.done [#allocation4], 256
    $region13: #{tpu_custom_call.1} parent=1 // pred_fallthru
      _
    // Predicated region
    $region14: #{tpu_custom_call.1} parent=1 // pred_check
      _
    $region15: #{tpu_custom_call.1} parent=1 // pred_check_branch
      %46 = sbr.rel (0) target = $region17
    $region16: #{tpu_custom_call.1} parent=1 // pred_region
      %47 = dma.done [#allocation7], 256
    $region17: #{tpu_custom_call.1} parent=1 // pred_fallthru
      _
    %s48 = sadd.s32 0, 0
    %s49 = smul.u32 2, %s48
    %s50 = sadd.s32 0, 0
    %s51 = smul.u32 2, %s50
    %p52 = scmp.eq.s32.totalorder 0, 0
    // Predicated region
    $region18: #{tpu_custom_call.1} parent=1 // pred_check
      %p53 = pneg %p52
    $region19: #{tpu_custom_call.1} parent=1 // pred_check_branch
      %55 = sbr.rel (%p53) target = $region21
    $region20: #{tpu_custom_call.1} parent=1 // pred_region
      %56 = vst [vmem:[#allocation2] sm:$0xff] 0.0
      %57 = vst [vmem:[#allocation2 + $0x8] sm:$0xff] 0.0
    $region21: #{tpu_custom_call.1} parent=1 // pred_fallthru
      _
    %v58 = vld [vmem:[#allocation3] sm:$0xff]
    %v59 = vld [vmem:[#allocation3 + $0x8] sm:$0xff]
    %v60 = vld [vmem:[#allocation6] sm:$0xff]
    %v61 = vld [vmem:[#allocation6 + $0x8] sm:$0xff]
    %v62 = vsub.f32 %v58, %v60
    %v63 = vsub.f32 %v59, %v61
    %v64 = vmul.f32 %v62, %v62
    %v65 = vmul.f32 %v63, %v63
    %v66 = vld [vmem:[#allocation2] sm:$0xff]
    %v67 = vld [vmem:[#allocation2 + $0x8] sm:$0xff]
    %v68 = vadd.f32 %v66, %v64
    %v69 = vadd.f32 %v67, %v65
    %70 = vst [vmem:[#allocation2] sm:$0xff] %v68
    %71 = vst [vmem:[#allocation2 + $0x8] sm:$0xff] %v69
    // Predicated region
    $region22: #{tpu_custom_call.1} parent=1 // pred_check
      %p72 = pneg %p52
    $region23: #{tpu_custom_call.1} parent=1 // pred_check_branch
      %74 = sbr.rel (%p72) target = $region25
    $region24: #{tpu_custom_call.1} parent=1 // pred_region
      %v75 = vld [vmem:[#allocation2] sm:$0xff]
      %v76 = vld [vmem:[#allocation2 + $0x8] sm:$0xff]
      %v77 = vadd.f32 %v75, %v76
      %78 = vadd.xlane.f32.xlu0 %v77
      %v79 = vpop.xlane.xlu0 %78
      %v80 = vrot.slane %v79, 4
      %v81 = vadd.f32 %v79, %v80
      %v82 = vrot.slane %v81, 2
      %v83 = vadd.f32 %v81, %v82
      %v84 = vrot.slane %v83, 1
      %v85 = vadd.f32 %v83, %v84
      %s86 = vtos %v85
      %s87 = scalar_lea.smem [#allocation8], 0
      %88 = sst [smem:[%s87]] %s86
    $region25: #{tpu_custom_call.1} parent=1 // pred_fallthru
      _
    // Predicated region
    $region26: #{tpu_custom_call.1} parent=1 // pred_check
      _
    $region27: #{tpu_custom_call.1} parent=1 // pred_check_branch
      %90 = sbr.rel (0) target = $region29
    $region28: #{tpu_custom_call.1} parent=1 // pred_region
      %s92 = ssub.s32 16, 16
      %93 = vsyncadd [#allocation5], %s92
      %96 = dma.smem_to_hbm [#allocation8], 16, %s2, [#allocation5]
    $region29: #{tpu_custom_call.1} parent=1 // pred_fallthru
      _
    // Predicated region
    $region30: #{tpu_custom_call.1} parent=1 // pred_check
      _
    $region31: #{tpu_custom_call.1} parent=1 // pred_check_branch
      %98 = sbr.rel (0) target = $region33
    $region32: #{tpu_custom_call.1} parent=1 // pred_region
      %99 = dma.done [#allocation5], 16
    $region33: #{tpu_custom_call.1} parent=1 // pred_fallthru
      _
    %100 = sfence
    %101 = vsyncpa [#allocation4], 1
    %102 = vsyncpa [#allocation7], 1
    %103 = vsyncpa [#allocation5], 1

</llo_original>
